<compile_context>
chip_gen: v7x
topology: tpu7x:2x2x1
jax: 0.10.0
libtpu: 0.0.40
codegen_flags: <defaults>
</compile_context>

<pallas_src>
import jax
import jax.numpy as jnp
from jax.experimental import pallas as pl
from jax.experimental.pallas import tpu as pltpu

_INT32_MAX = jnp.iinfo(jnp.int32).max
_MAX_TILE_N = 512     # rows per grid step (multiple of 8)
_MAX_TILE_C = 2048    # classes per grid step (multiple of 128)


def _accuracy_kernel(pred_ref, tgt_ref, count_ref, max_sc, arg_sc):
    """Streaming first-index argmax over class tiles, then compare with target."""
    k = pl.program_id(1)
    nk = pl.num_programs(1)

    @pl.when(k == 0)
    def _init():
        max_sc[...] = jnp.full(max_sc.shape, -jnp.inf, dtype=max_sc.dtype)
        arg_sc[...] = jnp.full(arg_sc.shape, _INT32_MAX, dtype=arg_sc.dtype)

    x = pred_ref[...]                                          # (TILE_N, TILE_C) f32
    tile_c = x.shape[-1]
    col = jax.lax.broadcasted_iota(jnp.int32, x.shape, 1) + k * tile_c

    tile_max = jnp.max(x, axis=-1, keepdims=True)              # (TILE_N, 1)
    # First index achieving the tile max (torch argmax tie-break = first index).
    tile_arg = jnp.min(jnp.where(x == tile_max, col, _INT32_MAX),
                       axis=-1, keepdims=True)                 # (TILE_N, 1) int32

    better = tile_max > max_sc[...]        # strict '>' keeps the earliest tile on ties
    arg_sc[...] = jnp.where(better, tile_arg, arg_sc[...])
    max_sc[...] = jnp.where(better, tile_max, max_sc[...])

    @pl.when(k == nk - 1)
    def _finalize():
        correct = (arg_sc[...] == tgt_ref[...]).astype(jnp.int32)   # (TILE_N, 1)
        cnt = jnp.sum(correct)
        # Lane-dense scalar broadcast: one unmasked (8,128) store per row tile.
        count_ref[...] = jnp.zeros(count_ref.shape, count_ref.dtype) + cnt


def _round_up(x, m):
    return ((x + m - 1) // m) * m


def _choose_tile(dim, base, max_tile):
    """Return (tile, padded_dim): tile is a multiple of `base`, <= max_tile, divides
    padded_dim. Prefers a divisor of the minimally padded dim (no extra padding);
    falls back to padding up to a multiple of max_tile."""
    p = _round_up(dim, base)
    if p <= max_tile:
        return p, p
    t = (max_tile // base) * base
    while t >= base:
        if p % t == 0 and t >= max_tile // 2:
            return t, p
        t -= base
    return max_tile, _round_up(dim, max_tile)


def _accuracy_count(logits, target):
    """#rows where argmax(logits, -1) == target. logits: (R, C) f32, target: (R,) i32."""
    rows, num_c = logits.shape
    tile_n, rows_p = _choose_tile(rows, 8, _MAX_TILE_N)
    tile_c, c_p = _choose_tile(num_c, 128, _MAX_TILE_C)

    if rows_p != rows or c_p != num_c:
        logits = jnp.pad(logits, ((0, rows_p - rows), (0, c_p - num_c)),
                         constant_values=-jnp.inf)
    if rows_p != rows:
        target = jnp.pad(target, (0, rows_p - rows), constant_values=-1)
    target = target.reshape(rows_p, 1)

    grid_n = rows_p // tile_n
    grid_c = c_p // tile_c

    counts = pl.pallas_call(
        _accuracy_kernel,
        out_shape=jax.ShapeDtypeStruct((grid_n, 8, 128), jnp.int32),
        grid_spec=pltpu.PrefetchScalarGridSpec(
            num_scalar_prefetch=0,
            grid=(grid_n, grid_c),
            in_specs=[
                pl.BlockSpec((tile_n, tile_c), lambda i, k: (i, k)),
                pl.BlockSpec((tile_n, 1), lambda i, k: (i, 0)),
            ],
            out_specs=pl.BlockSpec((1, 8, 128), lambda i, k: (i, 0, 0)),
            scratch_shapes=[
                pltpu.VMEM((tile_n, 1), jnp.float32),   # running row max
                pltpu.VMEM((tile_n, 1), jnp.int32),     # running first argmax
            ],
        ),
        compiler_params=pltpu.CompilerParams(
            dimension_semantics=("parallel", "arbitrary"),
            vmem_limit_bytes=32 * 1024 * 1024,
        ),
    )(logits, target)

    return counts[:, 0, 0].sum()


class Accuracy:
    """Pallas TPU port of the PyTorch Accuracy module.

    forward(pred, target) =
        sum(argmax(act(pred[..., :num_classes]), -1) == target) / pred.shape[0]

    softmax / sigmoid / none are all monotonic, so they never change the argmax;
    the activation is skipped entirely (mathematically identical result, no EUP work).
    """

    def __init__(self, num_classes, reduction="mean", apply_activation="softmax"):
        self.num_classes = num_classes
        self.reduction = reduction
        self.optimal = "max"
        if apply_activation not in ("softmax", "sigmoid", "none"):
            raise ValueError(f"Not support activation {apply_activation}")
        self.apply_activation = apply_activation

    def __call__(self, pred, target):
        return self.forward(pred, target)

    def forward(self, pred, target):
        pred = pred[..., : self.num_classes]
        assert pred.ndim > 1, (
            f"Expected pred tensor to have dims > 2, got size :{pred.shape}")
        assert pred.shape[:-1] == tuple(target.shape), (pred.shape, target.shape)

        n0 = pred.shape[0]                 # PyTorch divides by pred.size(0) only
        num_c = pred.shape[-1]
        rows = 1
        for d in pred.shape[:-1]:
            rows *= d

        logits = pred.reshape(rows, num_c).astype(jnp.float32)
        tgt = target.reshape(rows).astype(jnp.int32)   # torch int64 -> explicit int32

        count = _accuracy_count(logits, tgt)
        return count.astype(jnp.float32) / float(n0)


if __name__ == "__main__":
    key = jax.random.PRNGKey(0)
    k1, k2, k3, k4 = jax.random.split(key, 4)

    num_classes = 10
    acc = Accuracy(num_classes=num_classes)

    def ref_accuracy(pred, target, nc):
        # Pure-JAX mirror of the PyTorch module (softmax -> argmax -> eq -> sum/N).
        p = jax.nn.softmax(pred[..., :nc], axis=-1)
        am = jnp.argmax(p, axis=-1)
        return jnp.sum(am == target).astype(jnp.float32) / float(pred.shape[0])

    # Case 1: plain [N, C] logits (N=8, C=16, sliced to 10 classes).
    pred1 = jax.random.normal(k1, (8, 16), dtype=jnp.float32)
    tgt1 = jax.random.randint(k2, (8,), 0, num_classes, dtype=jnp.int32)
    out1 = acc(pred1, tgt1)
    jax.block_until_ready(out1)
    assert jnp.allclose(out1, ref_accuracy(pred1, tgt1, num_classes)), (
        out1, ref_accuracy(pred1, tgt1, num_classes))

    # Case 2: higher-rank logits [B, S, C]; division is by B = pred.shape[0].
    pred2 = jax.random.normal(k3, (2, 4, 16), dtype=jnp.float32)
    tgt2 = jax.random.randint(k4, (2, 4), 0, num_classes, dtype=jnp.int32)
    out2 = acc(pred2, tgt2)
    jax.block_until_ready(out2)
    assert jnp.allclose(out2, ref_accuracy(pred2, tgt2, num_classes)), (
        out2, ref_accuracy(pred2, tgt2, num_classes))

    print("KERNEL_OK")
</pallas_src>

<mosaic_0001>
module attributes {stable_mosaic.version = 11 : i64} {
  func.func @_accuracy_kernel(%arg0: i32, %arg1: i32, %arg2: memref<8x128xf32, #tpu.memory_space<vmem>>, %arg3: memref<8x1xi32, #tpu.memory_space<vmem>>, %arg4: memref<1x8x128xi32, #tpu.memory_space<vmem>>, %arg5: memref<8x1xf32, #tpu.memory_space<vmem>>, %arg6: memref<8x1xi32, #tpu.memory_space<vmem>>) attributes {dimension_semantics = [#tpu.dimension_semantics<parallel>, #tpu.dimension_semantics<arbitrary>], iteration_bounds = array<i64: 1, 1>, scalar_prefetch = 0 : i64, scratch_operands = 2 : i64, tpu.core_type = #tpu.core_type<tc>, window_params = [{transform_indices = @transform_0, window_bounds = array<i64: 8, 128>}, {transform_indices = @transform_1, window_bounds = array<i64: 8, 1>}, {transform_indices = @transform_2, window_bounds = array<i64: 1, 8, 128>}]} {
    %c0_i32 = arith.constant 0 : i32
    %0 = arith.cmpi eq, %arg1, %c0_i32 : i32
    %1 = arith.extui %0 : i1 to i32
    %c0_i32_0 = arith.constant 0 : i32
    %2 = arith.cmpi ne, %1, %c0_i32_0 : i32
    scf.if %2 {
      %cst_15 = arith.constant 0xFF800000 : f32
      %27 = vector.broadcast %cst_15 : f32 to vector<8x1xf32>
      %c0_16 = arith.constant 0 : index
      %c0_17 = arith.constant 0 : index
      %28 = vector.load %arg5[%c0_16, %c0_17] : memref<8x1xf32, #tpu.memory_space<vmem>>, vector<8x1xf32>
      tpu.vector_store %arg5[%c0_16, %c0_17], %27 {strides = array<i32>} : memref<8x1xf32, #tpu.memory_space<vmem>>, vector<8x1xf32>,
      %c2147483647_i32_18 = arith.constant 2147483647 : i32
      %29 = vector.broadcast %c2147483647_i32_18 : i32 to vector<8x1xi32>
      %c0_19 = arith.constant 0 : index
      %c0_20 = arith.constant 0 : index
      %30 = vector.load %arg6[%c0_19, %c0_20] : memref<8x1xi32, #tpu.memory_space<vmem>>, vector<8x1xi32>
      tpu.vector_store %arg6[%c0_19, %c0_20], %29 {strides = array<i32>} : memref<8x1xi32, #tpu.memory_space<vmem>>, vector<8x1xi32>,
    } else {
    }
    %c0 = arith.constant 0 : index
    %c0_1 = arith.constant 0 : index
    %3 = vector.load %arg2[%c0, %c0_1] : memref<8x128xf32, #tpu.memory_space<vmem>>, vector<8x128xf32>
    %4 = tpu.iota {dimensions = array<i32: 1>} : vector<8x128xi32>
    %c128_i32 = arith.constant 128 : i32
    %5 = arith.muli %arg1, %c128_i32 : i32
    %6 = vector.broadcast %5 : i32 to vector<8x128xi32>
    %7 = arith.addi %4, %6 : vector<8x128xi32>
    %cst = arith.constant dense<0xFF800000> : vector<8xf32>
    %8 = vector.multi_reduction <maximumf>, %3, %cst [1] : vector<8x128xf32> to vector<8xf32>
    %9 = vector.shape_cast %8 : vector<8xf32> to vector<8x1xf32>
    %10 = vector.broadcast %9 : vector<8x1xf32> to vector<8x128xf32>
    %11 = arith.cmpf oeq, %3, %10 : vector<8x128xf32>
    %c2147483647_i32 = arith.constant 2147483647 : i32
    %12 = vector.broadcast %c2147483647_i32 : i32 to vector<8x128xi32>
    %13 = arith.select %11, %7, %12 : vector<8x128xi1>, vector<8x128xi32>
    %cst_2 = arith.constant dense<2147483647> : vector<8xi32>
    %14 = vector.multi_reduction <minsi>, %13, %cst_2 [1] : vector<8x128xi32> to vector<8xi32>
    %15 = vector.shape_cast %14 : vector<8xi32> to vector<8x1xi32>
    %c0_3 = arith.constant 0 : index
    %c0_4 = arith.constant 0 : index
    %16 = vector.load %arg5[%c0_3, %c0_4] : memref<8x1xf32, #tpu.memory_space<vmem>>, vector<8x1xf32>
    %17 = arith.cmpf ogt, %9, %16 : vector<8x1xf32>
    %c0_5 = arith.constant 0 : index
    %c0_6 = arith.constant 0 : index
    %18 = vector.load %arg6[%c0_5, %c0_6] : memref<8x1xi32, #tpu.memory_space<vmem>>, vector<8x1xi32>
    %19 = arith.select %17, %15, %18 : vector<8x1xi1>, vector<8x1xi32>
    %c0_7 = arith.constant 0 : index
    %c0_8 = arith.constant 0 : index
    %20 = vector.load %arg6[%c0_7, %c0_8] : memref<8x1xi32, #tpu.memory_space<vmem>>, vector<8x1xi32>
    tpu.vector_store %arg6[%c0_7, %c0_8], %19 {strides = array<i32>} : memref<8x1xi32, #tpu.memory_space<vmem>>, vector<8x1xi32>,
    %c0_9 = arith.constant 0 : index
    %c0_10 = arith.constant 0 : index
    %21 = vector.load %arg5[%c0_9, %c0_10] : memref<8x1xf32, #tpu.memory_space<vmem>>, vector<8x1xf32>
    %22 = arith.select %17, %9, %21 : vector<8x1xi1>, vector<8x1xf32>
    %c0_11 = arith.constant 0 : index
    %c0_12 = arith.constant 0 : index
    %23 = vector.load %arg5[%c0_11, %c0_12] : memref<8x1xf32, #tpu.memory_space<vmem>>, vector<8x1xf32>
    tpu.vector_store %arg5[%c0_11, %c0_12], %22 {strides = array<i32>} : memref<8x1xf32, #tpu.memory_space<vmem>>, vector<8x1xf32>,
    %c0_i32_13 = arith.constant 0 : i32
    %24 = arith.cmpi eq, %arg1, %c0_i32_13 : i32
    %25 = arith.extui %24 : i1 to i32
    %c0_i32_14 = arith.constant 0 : i32
    %26 = arith.cmpi ne, %25, %c0_i32_14 : i32
    scf.if %26 {
      %c0_15 = arith.constant 0 : index
      %c0_16 = arith.constant 0 : index
      %27 = vector.load %arg6[%c0_15, %c0_16] : memref<8x1xi32, #tpu.memory_space<vmem>>, vector<8x1xi32>
      %c0_17 = arith.constant 0 : index
      %c0_18 = arith.constant 0 : index
      %28 = vector.load %arg3[%c0_17, %c0_18] : memref<8x1xi32, #tpu.memory_space<vmem>>, vector<8x1xi32>
      %29 = arith.cmpi eq, %27, %28 : vector<8x1xi32>
      %30 = arith.extui %29 : vector<8x1xi1> to vector<8x1xi32>
      %31 = vector.shape_cast %30 : vector<8x1xi32> to vector<1x8x1xi32>
      %cst_19 = arith.constant dense<0> : vector<1xi32>
      %32 = vector.multi_reduction <add>, %31, %cst_19 [1, 2] : vector<1x8x1xi32> to vector<1xi32>
      %33 = vector.shape_cast %32 : vector<1xi32> to vector<1x1x1xi32>
      %34 = vector.extract %33[0, 0, 0] : i32 from vector<1x1x1xi32>
      %c0_i32_20 = arith.constant 0 : i32
      %35 = vector.broadcast %c0_i32_20 : i32 to vector<1x8x128xi32>
      %36 = vector.broadcast %34 : i32 to vector<1x8x128xi32>
      %37 = arith.addi %35, %36 : vector<1x8x128xi32>
      %c0_21 = arith.constant 0 : index
      %c0_22 = arith.constant 0 : index
      %c0_23 = arith.constant 0 : index
      %38 = vector.load %arg4[%c0_21, %c0_22, %c0_23] : memref<1x8x128xi32, #tpu.memory_space<vmem>>, vector<1x8x128xi32>
      tpu.vector_store %arg4[%c0_21, %c0_22, %c0_23], %37 {strides = array<i32>} : memref<1x8x128xi32, #tpu.memory_space<vmem>>, vector<1x8x128xi32>,
    } else {
    }
    return
  }
  func.func @transform_0(%arg0: i32, %arg1: i32) -> (i32, i32) {
    %c0_i32 = arith.constant 0 : i32
    return %arg0, %arg1 : i32, i32
  }
  func.func @transform_1(%arg0: i32, %arg1: i32) -> (i32, i32) {
    %c0_i32 = arith.constant 0 : i32
    %c0_i32_0 = arith.constant 0 : i32
    return %arg0, %c0_i32 : i32, i32
  }
  func.func @transform_2(%arg0: i32, %arg1: i32) -> (i32, i32, i32) {
    %c0_i32 = arith.constant 0 : i32
    %c0_i32_0 = arith.constant 0 : i32
    %c0_i32_1 = arith.constant 0 : i32
    return %arg0, %c0_i32, %c0_i32_0 : i32, i32, i32
  }
}

</mosaic_0001>

<llo_original>
// kernel: tpu_custom_call.1
$region0: #{tpu_custom_call.1}
  #allocation0 [shape = 'u32[]', space=smem, size = 0x4, offset = 0x4, fixed_abs, tag = 'smem constant byte address 0x4 - core index']
  #allocation1 [shape = 'u32[144,128]{1,0:T(1,128)}', space=vmem, size = 0x12000, scoped, tag = 'internal scratch']
  #allocation2 [shape = 'f32[8,1]{1,0:T(8,128)}', space=vmem, size = 0x1000, scoped, tag = 'scratch operand']
  #allocation3 [shape = 's32[8,1]{1,0:T(8,128)}', space=vmem, size = 0x1000, scoped, tag = 'scratch operand']
  %s0 = inlined_call_operand.vmem [shape: f32[8,128], index: 0, kind: input, shape index: {}]
  %s1 = inlined_call_operand.vmem [shape: s32[8,1], index: 1, kind: input, shape index: {}]
  %s2 = inlined_call_operand.hbm [shape: s32[1,8,128], index: 2, kind: output, shape index: {}]
  %s3 = sld [smem:[#allocation0]]
  $region26: #{tpu_custom_call.1} parent=0
    _
  %s5 = ssub.s32 1, %s3
  %s6 = scalar_select 0, %s5, %s3
  $region1: #{tpu_custom_call.1} parent=0
    #allocation4 [shape = 'u8[4096]{0}', space=vmem, size = 0x1000, scoped, tag = 'output window, operand 0, single buffered']
    #allocation5 [shape = 's32[1]{0}', space=sflag, size = 0x4, scoped, tag = 'scoped memory for tpu_custom_call.1']
    %7 = vsyncpa [#allocation5], 0
    // Predicated region
    $region2: #{tpu_custom_call.1} parent=1 // pred_check
      _
    $region3: #{tpu_custom_call.1} parent=1 // pred_check_branch
      %9 = sbr.rel (0) target = $region5
    $region4: #{tpu_custom_call.1} parent=1 // pred_region
      _
    $region5: #{tpu_custom_call.1} parent=1 // pred_fallthru
      _
    // Predicated region
    $region6: #{tpu_custom_call.1} parent=1 // pred_check
      _
    $region7: #{tpu_custom_call.1} parent=1 // pred_check_branch
      %11 = sbr.rel (0) target = $region9
    $region8: #{tpu_custom_call.1} parent=1 // pred_region
      _
    $region9: #{tpu_custom_call.1} parent=1 // pred_fallthru
      _
    %p12 = scmp.eq.s32.totalorder 0, 0
    // Predicated region
    $region10: #{tpu_custom_call.1} parent=1 // pred_check
      %p13 = pneg %p12
    $region11: #{tpu_custom_call.1} parent=1 // pred_check_branch
      %15 = sbr.rel (%p13) target = $region13
    $region12: #{tpu_custom_call.1} parent=1 // pred_region
      %vm16 = vcmask 7168
      %17 = vst.msk [vmem:[#allocation2] sm:$0xff] %vm16, -inf
      %18 = vst.msk [vmem:[#allocation3] sm:$0xff] %vm16, 2147483647
    $region13: #{tpu_custom_call.1} parent=1 // pred_fallthru
      _
    %v19 = vld [vmem:[%s0] sm:$0xff]
    %v20 = vlaneseq
    %v21 = vand.u32 %v20, 127
    %s22 = smul.u32 0, 128
    %v23 = vstv %s22
    %v24 = vadd.s32 %v21, %v23
    %25 = vmax.xlane.f32.xlu0 %v19
    %v26 = vpop.xlane.xlu0 %25
    %vm27 = vcmp.eq.f32.partialorder %v19, %v26
    %v28 = vsel %vm27, %v24, 2147483647
    %v29 = vand.u32 %v28, 65535
    %v30 = vshra.s32 %v28, 16
    %v31 = vcvt.s32.f32 %v29
    %v32 = vcvt.s32.f32 %v30
    %33 = vmin.xlane.f32.xlu0 %v32
    %v34 = vpop.xlane.xlu0 %33
    %vm35 = vcmp.eq.f32.partialorder %v32, %v34
    %v36 = vsel %vm35, %v31, inf
    %37 = vmin.xlane.f32.xlu0 %v36
    %v38 = vpop.xlane.xlu0 %37
    %v39 = vcvt.f32.s32 %v38
    %v40 = vcvt.f32.s32 %v34
    %v41 = vshll.u32 %v40, 16
    %v42 = vadd.s32 %v41, %v39
    %v43 = vld [vmem:[#allocation2] sm:$0xff]
    %vm44 = vcmp.gt.f32.partialorder %v26, %v43
    %v45 = vld [vmem:[#allocation3] sm:$0xff]
    %v46 = vsel %vm44, %v42, %v45
    %vm47 = vcmask 7168
    %48 = vst.msk [vmem:[#allocation3] sm:$0xff] %vm47, %v46
    %v49 = vld [vmem:[#allocation2] sm:$0xff]
    %v50 = vsel %vm44, %v26, %v49
    %51 = vst.msk [vmem:[#allocation2] sm:$0xff] %vm47, %v50
    // Predicated region
    $region14: #{tpu_custom_call.1} parent=1 // pred_check
      %p52 = pneg %p12
    $region15: #{tpu_custom_call.1} parent=1 // pred_check_branch
      %54 = sbr.rel (%p52) target = $region17
    $region16: #{tpu_custom_call.1} parent=1 // pred_region
      %v55 = vld [vmem:[#allocation3] sm:$0xff]
      %v56 = vld [vmem:[%s1] sm:$0xff]
      %vm57 = vcmp.eq.s32.totalorder %v55, %v56
      %v58 = vsel %vm57, 1, 0
      %v59 = vsel %vm47, %v58, 0
      %v60 = vand.u32 %v59, 65535
      %v61 = vshrl.u32 %v59, 16
      %v62 = vcvt.s32.f32 %v60
      %v63 = vcvt.s32.f32 %v61
      %64 = vadd.xlane.f32.xlu0 %v62
      %v65 = vpop.xlane.xlu0 %64
      %66 = vadd.xlane.f32.xlu0 %v63
      %v67 = vpop.xlane.xlu0 %66
      %v68 = vcvt.f32.s32 %v65
      %v69 = vcvt.f32.s32 %v67
      %v70 = vshll.u32 %v69, 16
      %v71 = vadd.s32 %v70, %v68
      %v72 = vrot.slane %v71, 4
      %v73 = vadd.s32 %v71, %v72
      %v74 = vrot.slane %v73, 2
      %v75 = vadd.s32 %v73, %v74
      %v76 = vrot.slane %v75, 1
      %v77 = vadd.s32 %v75, %v76
      %s78 = vtos %v77
      %v79 = vstv %s78
      %80 = vst [vmem:[#allocation4] sm:$0xff] %v79
    $region17: #{tpu_custom_call.1} parent=1 // pred_fallthru
      _
    // Predicated region
    $region18: #{tpu_custom_call.1} parent=1 // pred_check
      _
    $region19: #{tpu_custom_call.1} parent=1 // pred_check_branch
      %82 = sbr.rel (0) target = $region21
    $region20: #{tpu_custom_call.1} parent=1 // pred_region
      %s84 = ssub.s32 128, 128
      %85 = vsyncadd [#allocation5], %s84
      %s87 = sshll.u32 [#allocation4], 4
      %s88 = int_to_ptr.vmem [resolvable:$true] %s87
      %90 = dma.vmem_to_hbm [thread:$0]  %s88, 128, %s2, [#allocation5]
    $region21: #{tpu_custom_call.1} parent=1 // pred_fallthru
      _
    // Predicated region
    $region22: #{tpu_custom_call.1} parent=1 // pred_check
      _
    $region23: #{tpu_custom_call.1} parent=1 // pred_check_branch
      %92 = sbr.rel (0) target = $region25
    $region24: #{tpu_custom_call.1} parent=1 // pred_region
      %93 = dma.done [#allocation5], 128
    $region25: #{tpu_custom_call.1} parent=1 // pred_fallthru
      _
    %94 = vsyncpa [#allocation5], 1

</llo_original>
